<compile_context>
chip_gen: v7x
topology: tpu7x:2x2x1
jax: 0.10.0
libtpu: 0.0.40
codegen_flags: <defaults>
</compile_context>

<pallas_src>
import jax
import jax.numpy as jnp
import numpy as np
from jax.experimental import pallas as pl
from jax.experimental.pallas import tpu as pltpu


# --------------------------------------------------------------------------------
# Pallas kernels
# --------------------------------------------------------------------------------
def _alpha_blend_rowalpha_kernel(a_ref, xs_ref, xt_ref, o_ref):
    # a_ref: (tr, 1) per-row alpha, broadcast over lanes on the VPU.
    a = a_ref[...].astype(jnp.float32)
    xs = xs_ref[...].astype(jnp.float32)
    xt = xt_ref[...].astype(jnp.float32)
    o_ref[...] = (xt + a * (xs - xt)).astype(o_ref.dtype)


def _alpha_blend_scalar_kernel(a_ref, xs_ref, xt_ref, o_ref):
    # a_ref: (1,) f32 scalar alpha living in SMEM (no HBM alpha stream at all).
    a = a_ref[0]
    xs = xs_ref[...].astype(jnp.float32)
    xt = xt_ref[...].astype(jnp.float32)
    o_ref[...] = (xt + a * (xs - xt)).astype(o_ref.dtype)


# --------------------------------------------------------------------------------
# Tiling / VMEM-limit helpers
# --------------------------------------------------------------------------------
def _choose_tiles(R, L, itemsize):
    """Pick (row_tile, lane_tile, row_mult): lane-dense, ~4 MiB blocks, VMEM-safe."""
    # Sub-32-bit dtypes pack rows along sublanes: 8 (f32), 16 (bf16), 32 (int8/fp8).
    row_mult = max(8, 32 // itemsize)
    block_budget = 4 << 20          # ~4 MiB per (xs / xt / out) stream block

    def lane_pad(n):                # VMEM lane footprint (padded to 128)
        return ((n + 127) // 128) * 128

    # Prefer the full lane extent (one contiguous HBM DMA per block, exempt from the
    # 128-divisibility rule) whenever `row_mult` rows fit within the block budget.
    if row_mult * lane_pad(L) * itemsize <= block_budget:
        tl = L
    else:
        tl = 2048                   # multiple of 128 -> unmasked stores

    if R % row_mult == 0:
        tr = block_budget // (lane_pad(tl) * itemsize)
        tr = max(row_mult, min(R, (tr // row_mult) * row_mult))
        # v7x megacore: a single-block grid leaves one TensorCore idle; guarantee
        # >= 2 blocks along the (parallel) row axis when the tensor allows it.
        if tr >= R and pl.cdiv(L, tl) == 1 and R >= 2 * row_mult:
            tr = ((pl.cdiv(R, 2) + row_mult - 1) // row_mult) * row_mult
    else:
        # R not a multiple of the sublane packing: use the full row extent (exempt
        # from the 8-divisibility rule).  Cap the block at ~2 MiB so the working
        # set stays small even before vmem_limit_bytes kicks in (v5e safety).
        tr = R
        if R * lane_pad(tl) * itemsize > (2 << 20):
            tl = max(128, ((2 << 20) // (R * itemsize)) // 128 * 128)
    return tr, tl, row_mult


def _vmem_limit(tr, tl, itemsize, row_mult, has_row_alpha):
    """Scoped-VMEM limit covering the double-buffered working set, capped for v7x."""
    sub = ((tr + row_mult - 1) // row_mult) * row_mult
    lane = ((tl + 127) // 128) * 128
    block = sub * lane * itemsize
    needed = 3 * 2 * block                       # xs / xt / out, double-buffered
    if has_row_alpha:
        needed += 2 * sub * 128 * itemsize       # (tr, 1) alpha column, lane-padded
    needed += 2 << 20                            # compiler-internal scratch headroom
    # Floor above v5e's 16 MiB default scoped limit; ceiling under v7x's 64 MiB/TC.
    return int(min(48 << 20, max(32 << 20, needed)))


# --------------------------------------------------------------------------------
# pallas_call wrappers
# --------------------------------------------------------------------------------
def _blend_rows(alpha_rows, xs2d, xt2d, out_dtype):
    """Per-row alpha blend (learned_with_images)."""
    R, L = xs2d.shape
    itemsize = jnp.dtype(xs2d.dtype).itemsize
    tr, tl, row_mult = _choose_tiles(R, L, itemsize)
    # Lane axis must stay the INNER grid dim so the (tr, 1) alpha block index is
    # unchanged across consecutive steps and is not re-DMA'd per lane step.
    grid = (pl.cdiv(R, tr), pl.cdiv(L, tl))
    return pl.pallas_call(
        _alpha_blend_rowalpha_kernel,
        out_shape=jax.ShapeDtypeStruct((R, L), out_dtype),
        grid=grid,
        in_specs=[
            pl.BlockSpec((tr, 1), lambda i, j: (i, 0)),
            pl.BlockSpec((tr, tl), lambda i, j: (i, j)),
            pl.BlockSpec((tr, tl), lambda i, j: (i, j)),
        ],
        out_specs=pl.BlockSpec((tr, tl), lambda i, j: (i, j)),
        compiler_params=pltpu.CompilerParams(
            dimension_semantics=("parallel", "parallel"),
            vmem_limit_bytes=_vmem_limit(tr, tl, itemsize, row_mult, True)),
    )(alpha_rows, xs2d, xt2d)


def _blend_scalar(alpha_scalar_f32, xs2d, xt2d, out_dtype):
    """Scalar alpha blend (fixed / learned): alpha rides in SMEM, no HBM alpha stream."""
    R, L = xs2d.shape
    itemsize = jnp.dtype(xs2d.dtype).itemsize
    tr, tl, row_mult = _choose_tiles(R, L, itemsize)
    grid = (pl.cdiv(R, tr), pl.cdiv(L, tl))
    return pl.pallas_call(
        _alpha_blend_scalar_kernel,
        out_shape=jax.ShapeDtypeStruct((R, L), out_dtype),
        grid=grid,
        in_specs=[
            pl.BlockSpec(memory_space=pltpu.MemorySpace.SMEM),   # (1,) f32 alpha
            pl.BlockSpec((tr, tl), lambda i, j: (i, j)),
            pl.BlockSpec((tr, tl), lambda i, j: (i, j)),
        ],
        out_specs=pl.BlockSpec((tr, tl), lambda i, j: (i, j)),
        compiler_params=pltpu.CompilerParams(
            dimension_semantics=("parallel", "parallel"),
            vmem_limit_bytes=_vmem_limit(tr, tl, itemsize, row_mult, False)),
    )(alpha_scalar_f32, xs2d, xt2d)


# --------------------------------------------------------------------------------
# AlphaBlender forward
# --------------------------------------------------------------------------------
def alpha_blender_forward(x_spatial, x_temporal, mix_factor,
                          image_only_indicator=None,
                          merge_strategy="learned_with_images",
                          switch_spatial_to_temporal_mix=False):
    if merge_strategy not in ("learned", "fixed", "learned_with_images"):
        raise ValueError(f"merge_strategy needs to be in "
                         f"['learned', 'fixed', 'learned_with_images'], got {merge_strategy}")

    dtype = x_spatial.dtype
    ndims = x_spatial.ndim
    if ndims not in (3, 5):
        # TODO(synk): fixed/learned strategies with ndims not in (3, 5) are not wired up.
        raise ValueError(f"Unexpected ndims {ndims}. Dimensions should be 3 or 5")

    # ---- tiny alpha computation (JAX glue; O(1) or O(B*T) scalars) ----
    if merge_strategy in ("fixed", "learned"):
        a = mix_factor.reshape(()) if merge_strategy == "fixed" \
            else jax.nn.sigmoid(mix_factor).reshape(())
        a = a.astype(dtype)                                      # match torch .to(dtype)
        if switch_spatial_to_temporal_mix:
            a = (1.0 - a).astype(dtype)
        alpha_scalar = a.astype(jnp.float32).reshape(1)          # (1,) for SMEM

        if ndims == 5:
            B, C, T, H, W = x_spatial.shape
            R, L = B * C * T, H * W
        else:
            BT, S, C = x_spatial.shape
            R, L = BT, S * C
        out = _blend_scalar(alpha_scalar,
                            x_spatial.reshape(R, L), x_temporal.reshape(R, L), dtype)
        return out.reshape(x_spatial.shape)

    # learned_with_images
    if image_only_indicator is None:
        raise ValueError("Please provide image_only_indicator to use "
                         "learned_with_images merge strategy")
    sig = jax.nn.sigmoid(mix_factor).reshape(())
    per_frame = jnp.where(image_only_indicator.astype(bool), 1.0, sig)       # (B, T)

    # ---- canonical (rows, lanes) flatten; alpha is constant along a row ----
    if ndims == 5:
        B, C, T, H, W = x_spatial.shape
        R, L = B * C * T, H * W
        a = jnp.broadcast_to(per_frame[:, None, :], (B, C, T))               # alpha[b, t] over C
        alpha_rows = a.reshape(R, 1).astype(dtype)
    else:
        BT, S, C = x_spatial.shape
        R, L = BT, S * C
        alpha_rows = per_frame.reshape(-1, 1).astype(dtype)                  # (B*T, 1)

    if switch_spatial_to_temporal_mix:
        alpha_rows = (1.0 - alpha_rows).astype(dtype)

    out = _blend_rows(alpha_rows,
                      x_spatial.reshape(R, L), x_temporal.reshape(R, L), dtype)
    return out.reshape(x_spatial.shape)


# --------------------------------------------------------------------------------
# Pure-JAX reference (mirrors the PyTorch module exactly)
# --------------------------------------------------------------------------------
def alpha_blender_reference(x_spatial, x_temporal, mix_factor, image_only_indicator,
                            merge_strategy, switch_spatial_to_temporal_mix):
    if merge_strategy == "fixed":
        alpha = mix_factor
    elif merge_strategy == "learned":
        alpha = jax.nn.sigmoid(mix_factor)
    elif merge_strategy == "learned_with_images":
        alpha = jnp.where(image_only_indicator.astype(bool),
                          jnp.ones((1, 1), x_spatial.dtype),
                          jax.nn.sigmoid(mix_factor)[..., None])
        if x_spatial.ndim == 5:
            alpha = alpha[:, None, :, None, None]
        elif x_spatial.ndim == 3:
            alpha = alpha.reshape(-1)[:, None, None]
        else:
            raise ValueError
    else:
        raise ValueError
    alpha = alpha.astype(x_spatial.dtype)
    if switch_spatial_to_temporal_mix:
        alpha = 1.0 - alpha
    return alpha * x_spatial + (1.0 - alpha) * x_temporal


# --------------------------------------------------------------------------------
if __name__ == "__main__":
    key = jax.random.PRNGKey(0)
    ks = jax.random.split(key, 4)
    mix_factor = jnp.array([0.3], jnp.float32)

    # --- learned_with_images, 5-D (B, C, T, H, W) ---
    B, C, T, H, W = 2, 8, 4, 16, 16
    xs5 = jax.random.normal(ks[0], (B, C, T, H, W), jnp.float32)
    xt5 = jax.random.normal(ks[1], (B, C, T, H, W), jnp.float32)
    image_only_indicator = jnp.array([[1.0, 0.0, 1.0, 0.0],
                                      [0.0, 0.0, 1.0, 1.0]], jnp.float32)   # (B, T)

    out5 = alpha_blender_forward(xs5, xt5, mix_factor, image_only_indicator,
                                 merge_strategy="learned_with_images")
    out5 = jax.block_until_ready(out5)
    ref5 = alpha_blender_reference(xs5, xt5, mix_factor, image_only_indicator,
                                   "learned_with_images", False)
    np.testing.assert_allclose(np.asarray(out5), np.asarray(ref5), rtol=1e-5, atol=1e-5)

    # --- learned_with_images, 3-D (B*T, S, C), switch_spatial_to_temporal_mix=True ---
    S, Ch = 16, 32
    xs3 = jax.random.normal(ks[2], (B * T, S, Ch), jnp.float32)
    xt3 = jax.random.normal(ks[3], (B * T, S, Ch), jnp.float32)
    out3 = alpha_blender_forward(xs3, xt3, mix_factor, image_only_indicator,
                                 merge_strategy="learned_with_images",
                                 switch_spatial_to_temporal_mix=True)
    out3 = jax.block_until_ready(out3)
    ref3 = alpha_blender_reference(xs3, xt3, mix_factor, image_only_indicator,
                                   "learned_with_images", True)
    np.testing.assert_allclose(np.asarray(out3), np.asarray(ref3), rtol=1e-5, atol=1e-5)

    # --- learned (scalar sigmoid alpha via SMEM), 3-D ---
    outl = alpha_blender_forward(xs3, xt3, mix_factor, None, merge_strategy="learned")
    outl = jax.block_until_ready(outl)
    refl = alpha_blender_reference(xs3, xt3, mix_factor, None, "learned", False)
    np.testing.assert_allclose(np.asarray(outl), np.asarray(refl), rtol=1e-5, atol=1e-5)

    # --- fixed (raw alpha buffer via SMEM), 5-D, with switch ---
    outf = alpha_blender_forward(xs5, xt5, mix_factor, None, merge_strategy="fixed",
                                 switch_spatial_to_temporal_mix=True)
    outf = jax.block_until_ready(outf)
    reff = alpha_blender_reference(xs5, xt5, mix_factor, None, "fixed", True)
    np.testing.assert_allclose(np.asarray(outf), np.asarray(reff), rtol=1e-5, atol=1e-5)

    # --- bf16 I/O (exercises dtype-aware row-tile rounding), learned_with_images ---
    xs5b, xt5b = xs5.astype(jnp.bfloat16), xt5.astype(jnp.bfloat16)
    outb = alpha_blender_forward(xs5b, xt5b, mix_factor, image_only_indicator,
                                 merge_strategy="learned_with_images")
    outb = jax.block_until_ready(outb)
    refb = alpha_blender_reference(xs5b, xt5b, mix_factor, image_only_indicator,
                                   "learned_with_images", False)
    np.testing.assert_allclose(np.asarray(outb, np.float32), np.asarray(refb, np.float32),
                               rtol=5e-2, atol=5e-2)

    assert np.isfinite(np.asarray(out5)).all() and np.isfinite(np.asarray(out3)).all()
    print("KERNEL_OK")
</pallas_src>

<mosaic_0001>
module attributes {stable_mosaic.version = 11 : i64} {
  func.func @_alpha_blend_rowalpha_kernel(%arg0: i32, %arg1: i32, %arg2: memref<32x1xf32, #tpu.memory_space<vmem>>, %arg3: memref<32x256xf32, #tpu.memory_space<vmem>>, %arg4: memref<32x256xf32, #tpu.memory_space<vmem>>, %arg5: memref<32x256xf32, #tpu.memory_space<vmem>>) attributes {dimension_semantics = [#tpu.dimension_semantics<parallel>, #tpu.dimension_semantics<parallel>], iteration_bounds = array<i64: 2, 1>, scalar_prefetch = 0 : i64, scratch_operands = 0 : i64, tpu.core_type = #tpu.core_type<tc>, window_params = [{transform_indices = @transform_0, window_bounds = array<i64: 32, 1>}, {transform_indices = @transform_1, window_bounds = array<i64: 32, 256>}, {transform_indices = @transform_2, window_bounds = array<i64: 32, 256>}, {transform_indices = @transform_3, window_bounds = array<i64: 32, 256>}]} {
    %c0 = arith.constant 0 : index
    %c0_0 = arith.constant 0 : index
    %0 = vector.load %arg2[%c0, %c0_0] : memref<32x1xf32, #tpu.memory_space<vmem>>, vector<32x1xf32>
    %c0_1 = arith.constant 0 : index
    %c0_2 = arith.constant 0 : index
    %1 = vector.load %arg3[%c0_1, %c0_2] : memref<32x256xf32, #tpu.memory_space<vmem>>, vector<32x256xf32>
    %c0_3 = arith.constant 0 : index
    %c0_4 = arith.constant 0 : index
    %2 = vector.load %arg4[%c0_3, %c0_4] : memref<32x256xf32, #tpu.memory_space<vmem>>, vector<32x256xf32>
    %3 = arith.subf %1, %2 : vector<32x256xf32>
    %4 = vector.broadcast %0 : vector<32x1xf32> to vector<32x256xf32>
    %5 = arith.mulf %4, %3 : vector<32x256xf32>
    %6 = arith.addf %2, %5 : vector<32x256xf32>
    %c0_5 = arith.constant 0 : index
    %c0_6 = arith.constant 0 : index
    %7 = vector.load %arg5[%c0_5, %c0_6] : memref<32x256xf32, #tpu.memory_space<vmem>>, vector<32x256xf32>
    tpu.vector_store %arg5[%c0_5, %c0_6], %6 {strides = array<i32>} : memref<32x256xf32, #tpu.memory_space<vmem>>, vector<32x256xf32>,
    return
  }
  func.func @transform_0(%arg0: i32, %arg1: i32) -> (i32, i32) {
    %c0_i32 = arith.constant 0 : i32
    %c0_i32_0 = arith.constant 0 : i32
    return %arg0, %c0_i32 : i32, i32
  }
  func.func @transform_1(%arg0: i32, %arg1: i32) -> (i32, i32) {
    %c0_i32 = arith.constant 0 : i32
    return %arg0, %arg1 : i32, i32
  }
  func.func @transform_2(%arg0: i32, %arg1: i32) -> (i32, i32) {
    %c0_i32 = arith.constant 0 : i32
    return %arg0, %arg1 : i32, i32
  }
  func.func @transform_3(%arg0: i32, %arg1: i32) -> (i32, i32) {
    %c0_i32 = arith.constant 0 : i32
    return %arg0, %arg1 : i32, i32
  }
}

</mosaic_0001>

<llo_original>
// kernel: tpu_custom_call.1
$region0: #{tpu_custom_call.1}
  #allocation0 [shape = 'u32[]', space=smem, size = 0x4, offset = 0x4, fixed_abs, tag = 'smem constant byte address 0x4 - core index']
  #allocation1 [shape = 'u32[144,128]{1,0:T(1,128)}', space=vmem, size = 0x12000, scoped, tag = 'internal scratch']
  %s0 = inlined_call_operand.vmem [shape: f32[64,1], index: 0, kind: input, shape index: {}]
  %s1 = inlined_call_operand.hbm [shape: f32[64,256], index: 1, kind: input, shape index: {}]
  %s2 = inlined_call_operand.hbm [shape: f32[64,256], index: 2, kind: input, shape index: {}]
  %s3 = inlined_call_operand.hbm [shape: f32[64,256], index: 3, kind: output, shape index: {}]
  %s4 = sld [smem:[#allocation0]]
  $region53: #{tpu_custom_call.1} parent=0
    _
  %s6 = ssub.s32 1, %s4
  %s7 = scalar_select 0, %s6, %s4
  $region1: #{tpu_custom_call.1} parent=0
    #allocation2 [shape = 'u8[65536]{0}', space=vmem, size = 0x10000, scoped, tag = 'input window, operand 1']
    #allocation3 [shape = 's32[2]{0}', space=sflag, size = 0x8, scoped, tag = 'scoped memory for tpu_custom_call.1']
    #allocation4 [shape = 's32[2]{0}', space=sflag, size = 0x8, scoped, tag = 'scoped memory for tpu_custom_call.1']
    #allocation5 [shape = 'u8[65536]{0}', space=vmem, size = 0x10000, scoped, tag = 'input window, operand 2']
    #allocation6 [shape = 's32[2]{0}', space=sflag, size = 0x8, scoped, tag = 'scoped memory for tpu_custom_call.1']
    #allocation7 [shape = 'u8[65536]{0}', space=vmem, size = 0x10000, scoped, tag = 'output window, operand 0']
    %8 = vsyncpa [#allocation3], 0
    %s9 = scalar_lea.sflag [#allocation3], 1
    %10 = vsyncpa %s9, 0
    %11 = vsyncpa [#allocation6], 0
    %s12 = scalar_lea.sflag [#allocation6], 1
    %13 = vsyncpa %s12, 0
    %14 = vsyncpa [#allocation4], 0
    %s15 = scalar_lea.sflag [#allocation4], 1
    %16 = vsyncpa %s15, 0
    loop: start=0, step=1, limit=4
    $region2: #{tpu_custom_call.1} parent=1 // loop_pre_header
      _
    $region3: #{tpu_custom_call.1} parent=1 // loop_header
      %s18 = sphi 0, %s22
      %p19 = scmp.ge.s32.totalorder %s18, 4
      %s25 = sphi 0, %s37
      %s26 = sphi 0, %s33
      %s27 = sphi 0, %s25
      %s28 = sphi 0, %s26
      %s29 = sphi 0, %s27
      %s30 = sphi 0, %s28
      %s40 = sphi 0, %s42
      %s43 = sphi 0, %s40
      %s44 = sphi 0, %s43
      %s60 = sphi 0, %s44
      %s68 = sphi 0, %s70
      %s71 = sphi 0, %s68
      %s72 = sphi 0, %s71
      %s88 = sphi 0, %s72
      %s96 = sphi 0, %s98
      %s99 = sphi 0, %s96
      %s100 = sphi 0, %s99
      %s116 = sphi 0, %s100
      %s124 = sphi 0, %s126
      %s127 = sphi 0, %s124
      %s128 = sphi 0, %s127
      %s144 = sphi 0, %s128
    $region4: #{tpu_custom_call.1} parent=1 // loop_header_branch
      %21 = sbr.rel (%p19) target = $region8
    $region5: #{tpu_custom_call.1} parent=1 // loop_body
      %s23 = ssub.s32 %s18, 1
      %s24 = ssub.s32 %s18, 2
      %s31 = sadd.s32 1, %s26
      %p32 = scmp.ge.s32.totalorder %s31, 1
      %s33 = scalar_select %p32, 0, %s31
      %s34 = sadd.s32 1, %s25
      %s35 = scalar_select %p32, %s34, %s25
      %p36 = scmp.ge.s32.totalorder %s35, 2
      %s37 = scalar_select %p36, 0, %s35
      %s38 = ssub.s32 %s25, %s37
      %p39 = scmp.eq.s32.totalorder %s38, 0
      %s41 = sadd.s32 %s40, 1
      %s42 = scalar_select %p39, %s40, %s41
      %p45 = pneg %p39
      %p46 = scmp.eq.s32.totalorder %s18, 1
      %p47 = por %p45, %p46
      %p48 = scmp.ne.s32.totalorder %s40, %s43
      %p49 = scmp.eq.s32.totalorder %s18, 0
      %p50 = por %p48, %p49
      %p51 = scmp.ne.s32.totalorder %s40, %s43
      %p52 = scmp.eq.s32.totalorder %s23, 1
      %p53 = por %p51, %p52
      %p54 = scmp.ne.s32.totalorder %s43, %s44
      %p55 = scmp.eq.s32.totalorder %s23, 0
      %p56 = por %p54, %p55
      %p57 = scmp.ne.s32.totalorder %s43, %s44
      %p58 = scmp.eq.s32.totalorder %s24, 1
      %p59 = por %p57, %p58
      %p61 = scmp.ne.s32.totalorder %s44, %s60
      %p62 = scmp.eq.s32.totalorder %s24, 0
      %p63 = por %p61, %p62
      %s64 = ssub.s32 %s25, %s37
      %s65 = ssub.s32 %s26, %s33
      %s66 = sor.u32 %s64, %s65
      %p67 = scmp.eq.s32.totalorder %s66, 0
      %s69 = sadd.s32 %s68, 1
      %s70 = scalar_select %p67, %s68, %s69
      %p73 = pneg %p67
      %p74 = scmp.eq.s32.totalorder %s18, 1
      %p75 = por %p73, %p74
      %p76 = scmp.ne.s32.totalorder %s68, %s71
      %p77 = scmp.eq.s32.totalorder %s18, 0
      %p78 = por %p76, %p77
      %p79 = scmp.ne.s32.totalorder %s68, %s71
      %p80 = scmp.eq.s32.totalorder %s23, 1
      %p81 = por %p79, %p80
      %p82 = scmp.ne.s32.totalorder %s71, %s72
      %p83 = scmp.eq.s32.totalorder %s23, 0
      %p84 = por %p82, %p83
      %p85 = scmp.ne.s32.totalorder %s71, %s72
      %p86 = scmp.eq.s32.totalorder %s24, 1
      %p87 = por %p85, %p86
      %p89 = scmp.ne.s32.totalorder %s72, %s88
      %p90 = scmp.eq.s32.totalorder %s24, 0
      %p91 = por %p89, %p90
      %s92 = ssub.s32 %s25, %s37
      %s93 = ssub.s32 %s26, %s33
      %s94 = sor.u32 %s92, %s93
      %p95 = scmp.eq.s32.totalorder %s94, 0
      %s97 = sadd.s32 %s96, 1
      %s98 = scalar_select %p95, %s96, %s97
      %p101 = pneg %p95
      %p102 = scmp.eq.s32.totalorder %s18, 1
      %p103 = por %p101, %p102
      %p104 = scmp.ne.s32.totalorder %s96, %s99
      %p105 = scmp.eq.s32.totalorder %s18, 0
      %p106 = por %p104, %p105
      %p107 = scmp.ne.s32.totalorder %s96, %s99
      %p108 = scmp.eq.s32.totalorder %s23, 1
      %p109 = por %p107, %p108
      %p110 = scmp.ne.s32.totalorder %s99, %s100
      %p111 = scmp.eq.s32.totalorder %s23, 0
      %p112 = por %p110, %p111
      %p113 = scmp.ne.s32.totalorder %s99, %s100
      %p114 = scmp.eq.s32.totalorder %s24, 1
      %p115 = por %p113, %p114
      %p117 = scmp.ne.s32.totalorder %s100, %s116
      %p118 = scmp.eq.s32.totalorder %s24, 0
      %p119 = por %p117, %p118
      %s120 = ssub.s32 %s25, %s37
      %s121 = ssub.s32 %s26, %s33
      %s122 = sor.u32 %s120, %s121
      %p123 = scmp.eq.s32.totalorder %s122, 0
      %s125 = sadd.s32 %s124, 1
      %s126 = scalar_select %p123, %s124, %s125
      %p129 = pneg %p123
      %p130 = scmp.eq.s32.totalorder %s18, 1
      %p131 = por %p129, %p130
      %p132 = scmp.ne.s32.totalorder %s124, %s127
      %p133 = scmp.eq.s32.totalorder %s18, 0
      %p134 = por %p132, %p133
      %p135 = scmp.ne.s32.totalorder %s124, %s127
      %p136 = scmp.eq.s32.totalorder %s23, 1
      %p137 = por %p135, %p136
      %p138 = scmp.ne.s32.totalorder %s127, %s128
      %p139 = scmp.eq.s32.totalorder %s23, 0
      %p140 = por %p138, %p139
      %p141 = scmp.ne.s32.totalorder %s127, %s128
      %p142 = scmp.eq.s32.totalorder %s24, 1
      %p143 = por %p141, %p142
      %p145 = scmp.ne.s32.totalorder %s128, %s144
      %p146 = scmp.eq.s32.totalorder %s24, 0
      %p147 = por %p145, %p146
      %p148 = scmp.le.s32.totalorder 1, %s18
      %p149 = scmp.lt.s32.totalorder %s18, 3
      %p150 = pnand %p148, %p149
      %p151 = pneg %p150
      // Predicated region
      $region9: #{tpu_custom_call.1} parent=5 // pred_check
        _
      $region10: #{tpu_custom_call.1} parent=5 // pred_check_branch
        %153 = sbr.rel (%p150) target = $region12
      $region11: #{tpu_custom_call.1} parent=5 // pred_region
        %s154 = ssub.s32 %s18, 1
      $region12: #{tpu_custom_call.1} parent=5 // pred_fallthru
        _
      %p155 = scmp.lt.s32.totalorder %s18, 2
      // Predicated region
      $region13: #{tpu_custom_call.1} parent=5 // pred_check
        %p156 = pneg %p155
      $region14: #{tpu_custom_call.1} parent=5 // pred_check_branch
        %158 = sbr.rel (%p156) target = $region16
      $region15: #{tpu_custom_call.1} parent=5 // pred_region
        // Predicated region
        $region17: #{tpu_custom_call.1} parent=15 // pred_check
          %p159 = pneg %p50
        $region18: #{tpu_custom_call.1} parent=15 // pred_check_branch
          %161 = sbr.rel (%p159) target = $region20
        $region19: #{tpu_custom_call.1} parent=15 // pred_region
          %s162 = smul.u32 4, %s25
          %p163 = scmp.lt.s32.totalorder %s162, 7
          %s164 = scalar_select %p163, %s162, 7
          %s165 = smul.addr %s164, 8
          %s166 = scalar_lea.vmem %s0, %s165
          %s167 = smul.u32 4, %s25
        $region20: #{tpu_custom_call.1} parent=15 // pred_fallthru
          _
        // Predicated region
        $region21: #{tpu_custom_call.1} parent=15 // pred_check
          %p168 = pneg %p78
        $region22: #{tpu_custom_call.1} parent=15 // pred_check_branch
          %170 = sbr.rel (%p168) target = $region24
        $region23: #{tpu_custom_call.1} parent=15 // pred_region
          %s171 = sand.u32 %s68, 1
          %s172 = scalar_lea.sflag [#allocation3], %s171
          %s173 = sand.u32 %s68, 1
          %s174 = smul.addr %s173, 64
          %s175 = scalar_lea.vmem [#allocation2], %s174
          %s176 = smul.u32 4, %s25
          %s177 = smul.u32 2, %s26
          %s179 = ssub.s32 1024, 1024
          %180 = vsyncadd %s172, %s179
          %s181 = smul.addr %s176, 2
          %s182 = sadd.s32 %s177, %s181
          %s183 = smul.addr %s182, 128
          %s184 = scalar_lea.hbm %s1, %s183
          %s185 = sshll.u32 %s175, 4
          %s186 = int_to_ptr.vmem [resolvable:$true] %s185
          %191 = dma.hbm_to_vmem [thread:$0]  %s184, 1024, %s186, %s172, 256, 256, 16
        $region24: #{tpu_custom_call.1} parent=15 // pred_fallthru
          _
        // Predicated region
        $region25: #{tpu_custom_call.1} parent=15 // pred_check
          %p192 = pneg %p106
        $region26: #{tpu_custom_call.1} parent=15 // pred_check_branch
          %194 = sbr.rel (%p192) target = $region28
        $region27: #{tpu_custom_call.1} parent=15 // pred_region
          %s195 = sand.u32 %s96, 1
          %s196 = scalar_lea.sflag [#allocation6], %s195
          %s197 = sand.u32 %s96, 1
          %s198 = smul.addr %s197, 64
          %s199 = scalar_lea.vmem [#allocation5], %s198
          %s200 = smul.u32 4, %s25
          %s201 = smul.u32 2, %s26
          %s203 = ssub.s32 1024, 1024
          %204 = vsyncadd %s196, %s203
          %s205 = smul.addr %s200, 2
          %s206 = sadd.s32 %s201, %s205
          %s207 = smul.addr %s206, 128
          %s208 = scalar_lea.hbm %s2, %s207
          %s209 = sshll.u32 %s199, 4
          %s210 = int_to_ptr.vmem [resolvable:$true] %s209
          %215 = dma.hbm_to_vmem [thread:$0]  %s208, 1024, %s210, %s196, 256, 256, 16
        $region28: #{tpu_custom_call.1} parent=15 // pred_fallthru
          _
      $region16: #{tpu_custom_call.1} parent=5 // pred_fallthru
        _
      %p216 = scmp.le.s32.totalorder 1, %s18
      %p217 = scmp.lt.s32.totalorder %s18, 3
      %p218 = pnand %p216, %p217
      %p219 = pneg %p218
      // Predicated region
      $region29: #{tpu_custom_call.1} parent=5 // pred_check
        _
      $region30: #{tpu_custom_call.1} parent=5 // pred_check_branch
        %221 = sbr.rel (%p218) target = $region32
      $region31: #{tpu_custom_call.1} parent=5 // pred_region
        %s222 = ssub.s32 %s18, 1
        %s223 = sand.u32 %s71, 1
        %s224 = scalar_lea.sflag [#allocation3], %s223
        %s225 = sand.u32 %s71, 1
        %s226 = smul.addr %s225, 64
        %s227 = scalar_lea.vmem [#allocation2], %s226
        // Predicated region
        $region33: #{tpu_custom_call.1} parent=31 // pred_check
          %p228 = pneg %p84
        $region34: #{tpu_custom_call.1} parent=31 // pred_check_branch
          %230 = sbr.rel (%p228) target = $region36
        $region35: #{tpu_custom_call.1} parent=31 // pred_region
          %231 = dma.done %s224, 1024
        $region36: #{tpu_custom_call.1} parent=31 // pred_fallthru
          _
        %s232 = sand.u32 %s99, 1
        %s233 = scalar_lea.sflag [#allocation6], %s232
        %s234 = sand.u32 %s99, 1
        %s235 = smul.addr %s234, 64
        %s236 = scalar_lea.vmem [#allocation5], %s235
        // Predicated region
        $region37: #{tpu_custom_call.1} parent=31 // pred_check
          %p237 = pneg %p112
        $region38: #{tpu_custom_call.1} parent=31 // pred_check_branch
          %239 = sbr.rel (%p237) target = $region40
        $region39: #{tpu_custom_call.1} parent=31 // pred_region
          %240 = dma.done %s233, 1024
        $region40: #{tpu_custom_call.1} parent=31 // pred_fallthru
          _
        %s241 = smul.u32 4, %s27
        %p242 = scmp.lt.s32.totalorder %s241, 7
        %s243 = scalar_select %p242, %s241, 7
        %s244 = smul.addr %s243, 8
        %s245 = scalar_lea.vmem %s0, %s244
        %p246 = pneg %p56
        %p247 = pneg %p53
        %s248 = sand.u32 %s71, 1
        %s249 = scalar_lea.sflag [#allocation3], %s248
        %s250 = sand.u32 %s71, 1
        %s251 = smul.addr %s250, 64
        %s252 = scalar_lea.vmem [#allocation2], %s251
        %p253 = pneg %p84
        %p254 = pneg %p81
        %s255 = sand.u32 %s99, 1
        %s256 = scalar_lea.sflag [#allocation6], %s255
        %s257 = sand.u32 %s99, 1
        %s258 = smul.addr %s257, 64
        %s259 = scalar_lea.vmem [#allocation5], %s258
        %p260 = pneg %p112
        %p261 = pneg %p109
        %p262 = pneg %p140
        %p263 = pneg %p137
        %s264 = sand.u32 %s127, 1
        %s265 = scalar_lea.sflag [#allocation4], %s264
        %s266 = sand.u32 %s127, 1
        %s267 = smul.addr %s266, 64
        %s268 = scalar_lea.vmem [#allocation7], %s267
        %s269 = smul.u32 4, %s27
        %p270 = scmp.lt.s32.totalorder %s269, 7
        %s271 = scalar_select %p270, %s269, 7
        %s272 = smul.addr %s271, 8
        %s273 = scalar_lea.vmem %s0, %s272
        %s274 = smul.u32 4, %s27
        %s275 = smul.u32 4, %s27
        %s276 = smul.u32 2, %s28
        %s277 = smul.u32 4, %s27
        %s278 = smul.u32 2, %s28
        %s279 = smul.u32 4, %s27
        %s280 = smul.u32 2, %s28
        %v281 = vld [vmem:[%s273] sm:$0xff]
        %v282 = vld [vmem:[%s273 + $0x8] sm:$0xff]
        %v283 = vld [vmem:[%s273 + $0x10] sm:$0xff]
        %v284 = vld [vmem:[%s273 + $0x18] sm:$0xff]
        %v285 = vld [vmem:[%s227] sm:$0xff]
        %v286 = vld [vmem:[%s227 + $0x8] sm:$0xff]
        %v287 = vld [vmem:[%s227 + $0x10] sm:$0xff]
        %v288 = vld [vmem:[%s227 + $0x18] sm:$0xff]
        %v289 = vld [vmem:[%s227 + $0x20] sm:$0xff]
        %v290 = vld [vmem:[%s227 + $0x28] sm:$0xff]
        %v291 = vld [vmem:[%s227 + $0x30] sm:$0xff]
        %v292 = vld [vmem:[%s227 + $0x38] sm:$0xff]
        %v293 = vld [vmem:[%s236] sm:$0xff]
        %v294 = vld [vmem:[%s236 + $0x8] sm:$0xff]
        %v295 = vld [vmem:[%s236 + $0x10] sm:$0xff]
        %v296 = vld [vmem:[%s236 + $0x18] sm:$0xff]
        %v297 = vld [vmem:[%s236 + $0x20] sm:$0xff]
        %v298 = vld [vmem:[%s236 + $0x28] sm:$0xff]
        %v299 = vld [vmem:[%s236 + $0x30] sm:$0xff]
        %v300 = vld [vmem:[%s236 + $0x38] sm:$0xff]
        %v301 = vsub.f32 %v285, %v293
        %v302 = vsub.f32 %v286, %v294
        %v303 = vsub.f32 %v287, %v295
        %v304 = vsub.f32 %v288, %v296
        %v305 = vsub.f32 %v289, %v297
        %v306 = vsub.f32 %v290, %v298
        %v307 = vsub.f32 %v291, %v299
        %v308 = vsub.f32 %v292, %v300
        %310 = vset.pattern.permute.xlu0 0
        %311 = vperm.xlu0 %310, %v281
        %v312 = vpop.permute.xlu0 %311
        %315 = vset.pattern.permute.xlu0 0
        %316 = vperm.xlu0 %315, %v282
        %v317 = vpop.permute.xlu0 %316
        %320 = vset.pattern.permute.xlu0 0
        %321 = vperm.xlu0 %320, %v283
        %v322 = vpop.permute.xlu0 %321
        %325 = vset.pattern.permute.xlu0 0
        %326 = vperm.xlu0 %325, %v284
        %v327 = vpop.permute.xlu0 %326
        %v329 = vmul.f32 %v312, %v301
        %v330 = vmul.f32 %v312, %v302
        %v331 = vmul.f32 %v317, %v303
        %v332 = vmul.f32 %v317, %v304
        %v333 = vmul.f32 %v322, %v305
        %v334 = vmul.f32 %v322, %v306
        %v335 = vmul.f32 %v327, %v307
        %v336 = vmul.f32 %v327, %v308
        %v337 = vadd.f32 %v293, %v329
        %v338 = vadd.f32 %v294, %v330
        %v339 = vadd.f32 %v295, %v331
        %v340 = vadd.f32 %v296, %v332
        %v341 = vadd.f32 %v297, %v333
        %v342 = vadd.f32 %v298, %v334
        %v343 = vadd.f32 %v299, %v335
        %v344 = vadd.f32 %v300, %v336
        %345 = vst [vmem:[%s268] sm:$0xff] %v337
        %346 = vst [vmem:[%s268 + $0x8] sm:$0xff] %v338
        %347 = vst [vmem:[%s268 + $0x10] sm:$0xff] %v339
        %348 = vst [vmem:[%s268 + $0x18] sm:$0xff] %v340
        %349 = vst [vmem:[%s268 + $0x20] sm:$0xff] %v341
        %350 = vst [vmem:[%s268 + $0x28] sm:$0xff] %v342
        %351 = vst [vmem:[%s268 + $0x30] sm:$0xff] %v343
        %352 = vst [vmem:[%s268 + $0x38] sm:$0xff] %v344
        %s353 = sand.u32 %s127, 1
        %s354 = scalar_lea.sflag [#allocation4], %s353
        %s355 = sand.u32 %s127, 1
        %s356 = smul.addr %s355, 64
        %s357 = scalar_lea.vmem [#allocation7], %s356
        // Predicated region
        $region41: #{tpu_custom_call.1} parent=31 // pred_check
          %p358 = pneg %p137
        $region42: #{tpu_custom_call.1} parent=31 // pred_check_branch
          %360 = sbr.rel (%p358) target = $region44
        $region43: #{tpu_custom_call.1} parent=31 // pred_region
          %s361 = smul.u32 4, %s27
          %s362 = smul.u32 2, %s28
          %s364 = ssub.s32 1024, 1024
          %365 = vsyncadd %s354, %s364
          %s366 = smul.addr %s361, 2
          %s367 = sadd.s32 %s362, %s366
          %s368 = smul.addr %s367, 128
          %s369 = scalar_lea.hbm %s3, %s368
          %s370 = sshll.u32 %s357, 4
          %s371 = int_to_ptr.vmem [resolvable:$true] %s370
          %376 = dma.vmem_to_hbm [thread:$0]  %s371, 1024, %s369, %s354, 256, 256, 16
        $region44: #{tpu_custom_call.1} parent=31 // pred_fallthru
          _
      $region32: #{tpu_custom_call.1} parent=5 // pred_fallthru
        _
      %p377 = scmp.le.s32.totalorder 2, %s18
      // Predicated region
      $region45: #{tpu_custom_call.1} parent=5 // pred_check
        %p378 = pneg %p377
      $region46: #{tpu_custom_call.1} parent=5 // pred_check_branch
        %380 = sbr.rel (%p378) target = $region48
      $region47: #{tpu_custom_call.1} parent=5 // pred_region
        %s381 = ssub.s32 %s18, 2
        // Predicated region
        $region49: #{tpu_custom_call.1} parent=47 // pred_check
          %p382 = pneg %p143
        $region50: #{tpu_custom_call.1} parent=47 // pred_check_branch
          %384 = sbr.rel (%p382) target = $region52
        $region51: #{tpu_custom_call.1} parent=47 // pred_region
          %s385 = sand.u32 %s128, 1
          %s386 = scalar_lea.sflag [#allocation4], %s385
          %s387 = sand.u32 %s128, 1
          %s388 = smul.addr %s387, 64
          %s389 = scalar_lea.vmem [#allocation7], %s388
          %390 = dma.done %s386, 1024
        $region52: #{tpu_custom_call.1} parent=47 // pred_fallthru
          _
      $region48: #{tpu_custom_call.1} parent=5 // pred_fallthru
        _
    $region6: #{tpu_custom_call.1} parent=1 // loop_footer
      %s22 = sadd.s32 1, %s18
    $region7: #{tpu_custom_call.1} parent=1 // loop_footer_branch
      %17 = sbr.rel target = $region3
    $region8: #{tpu_custom_call.1} parent=1 // loop_exit
      _
    %391 = vsyncpa [#allocation3], 1
    %s392 = scalar_lea.sflag [#allocation3], 1
    %393 = vsyncpa %s392, 1
    %394 = vsyncpa [#allocation6], 1
    %s395 = scalar_lea.sflag [#allocation6], 1
    %396 = vsyncpa %s395, 1
    %397 = vsyncpa [#allocation4], 1
    %s398 = scalar_lea.sflag [#allocation4], 1
    %399 = vsyncpa %s398, 1

</llo_original>
